<compile_context>
chip_gen: v7x
topology: tpu7x:2x2x1
jax: 0.10.0
libtpu: 0.0.40
codegen_flags: <defaults>
</compile_context>

<pallas_src>
import math

import jax
import jax.numpy as jnp
from jax import lax
from jax.experimental import pallas as pl
from jax.experimental.pallas import tpu as pltpu


# ---------------------------------------------------------------------------
# small helpers
# ---------------------------------------------------------------------------
def _round_up(x, m):
    return ((x + m - 1) // m) * m


def _itemsize(dt):
    return jnp.dtype(dt).itemsize


def _vmem_capacity_bytes():
    """Per-core VMEM capacity; conservative fallback if the query fails."""
    try:
        cap = int(pltpu.get_tpu_info().vmem_capacity_bytes)
        if cap >= (16 << 20):
            return cap
    except Exception:
        pass
    return 64 << 20  # v7x-sized fallback: safe on every generation


def nearest_upsample_int(x_nhwc, sh, sw):
    """Nearest-neighbour upsample for integer scale factors via
    broadcast+reshape (no gather).  Matches F.interpolate(mode='nearest')."""
    N, H, W, C = x_nhwc.shape
    if sh == 1 and sw == 1:
        return x_nhwc
    y = jnp.broadcast_to(x_nhwc[:, :, None, :, None, :], (N, H, sh, W, sw, C))
    return y.reshape(N, H * sh, W * sw, C)


# ---------------------------------------------------------------------------
# Kernel 1: 1x1 conv (pointwise projection), optional fused skip add
#   x:(tm, Cin) @ w:(Cin, Fp) + b:(1, Fp) [+ add:(tm, Fp)] -> out:(tm, Fp)
# ---------------------------------------------------------------------------
def _proj_kernel(x_ref, w_ref, b_ref, o_ref):
    x = x_ref[...].astype(w_ref.dtype)
    acc = jnp.dot(x, w_ref[...], preferred_element_type=jnp.float32)
    o_ref[...] = (acc + b_ref[...].astype(jnp.float32)).astype(o_ref.dtype)


def _proj_add_kernel(x_ref, w_ref, b_ref, a_ref, o_ref):
    x = x_ref[...].astype(w_ref.dtype)
    acc = jnp.dot(x, w_ref[...], preferred_element_type=jnp.float32)
    acc = acc + b_ref[...].astype(jnp.float32) + a_ref[...].astype(jnp.float32)
    o_ref[...] = acc.astype(o_ref.dtype)


def _pick_proj_rows(M, Cin, Fp, x_dt, w_dt, o_dt, has_add, budget):
    """Largest row tile whose double-buffered working set fits the budget."""
    cap = max(8, _round_up(M, 8))

    def fits(tm):
        b = 2 * tm * Cin * _itemsize(x_dt)            # x tile (double buffered)
        b += 2 * tm * Fp * _itemsize(o_dt)            # out tile
        if has_add:
            b += 2 * tm * Fp * _itemsize(o_dt)        # fused skip tile
        b += 2 * (Cin + 1) * Fp * _itemsize(w_dt)     # resident weight + bias
        b += 2 * tm * Fp * 4                          # f32 accumulator temps
        return b <= budget

    for cand in (4096, 2048, 1024, 512, 256, 128, 64, 32, 16, 8):
        tm = min(cand, cap)
        if fits(tm):
            return tm
    return 8


def pointwise_proj(x_nhwc, w, b, add_nhwc=None, *, out_dtype, vmem_budget,
                   vmem_limit):
    """1x1 conv over channels; `add_nhwc` (if given) is fused into the store.
    Output channels are lane-dense (Fp is a multiple of 128)."""
    N, H, W, Cin = x_nhwc.shape
    Fp = w.shape[1]
    M = N * H * W
    x2 = x_nhwc.reshape(M, Cin)
    b2 = b.reshape(1, Fp).astype(jnp.float32)

    tm = _pick_proj_rows(M, Cin, Fp, x_nhwc.dtype, w.dtype, out_dtype,
                         add_nhwc is not None, vmem_budget)

    in_specs = [
        pl.BlockSpec((tm, Cin), lambda i: (i, 0)),
        pl.BlockSpec((Cin, Fp), lambda i: (0, 0)),
        pl.BlockSpec((1, Fp), lambda i: (0, 0)),
    ]
    operands = [x2, w, b2]
    kernel = _proj_kernel
    if add_nhwc is not None:
        kernel = _proj_add_kernel
        in_specs.append(pl.BlockSpec((tm, Fp), lambda i: (i, 0)))
        operands.append(add_nhwc.reshape(M, Fp))

    out = pl.pallas_call(
        kernel,
        out_shape=jax.ShapeDtypeStruct((M, Fp), out_dtype),
        grid_spec=pltpu.PrefetchScalarGridSpec(
            num_scalar_prefetch=0,
            grid=(pl.cdiv(M, tm),),          # ragged tail handled by masking
            in_specs=in_specs,
            out_specs=pl.BlockSpec((tm, Fp), lambda i: (i, 0)),
        ),
        compiler_params=pltpu.CompilerParams(
            dimension_semantics=("parallel",),
            vmem_limit_bytes=vmem_limit,
        ),
    )(*operands)
    return out.reshape(N, H, W, Fp)


# ---------------------------------------------------------------------------
# Kernel 2: fused  prj_3(C3) + nearest-upsample(P4) add + 3x3 conv
#
# grid = (N, H3 // th).  Per step the kernel
#   1) projects a (th, W3) row tile of C3 and adds the H-replicated P4 rows
#      (P4 arrives already W-replicated; the H replication is a free leading-
#      axis broadcast in VMEM),
#   2) assembles a zero-padded (th+2, Wp, Fp) window in VMEM; the interior is
#      stored at sublane-aligned column offset 8, the top/bottom halo rows are
#      fetched (and only projected when they exist, via pl.when),
#   3) runs the 3x3 conv as 9 accumulating K=Fp dots with the bias folded in,
#      and writes the lane-dense output tile.
# ---------------------------------------------------------------------------
_PADL = 8   # left pad = one full sublane tile -> aligned window stores


def _p3_fused_kernel(c3_ref, c3t_ref, c3b_ref, p4_ref, p4t_ref, p4b_ref,
                     w3_ref, b3_ref, wc_ref, bc_ref, o_ref, win_ref):
    r = pl.program_id(1)
    nrt = pl.num_programs(1)
    _, th, W, Fp = o_ref.shape
    Cin = c3_ref.shape[3]
    r4 = p4_ref.shape[1]
    sh = th // r4
    cdt = win_ref.dtype

    w3 = w3_ref[...]                                   # (Cin, Fp) compute dtype
    b3 = b3_ref[...].astype(jnp.float32)               # (1, Fp)

    def project(c3rows):                               # (rows, W, Cin) -> (rows*W, Fp) f32
        rows = c3rows.shape[0]
        lhs = c3rows.reshape(rows * W, Cin).astype(cdt)
        return jnp.dot(lhs, w3, preferred_element_type=jnp.float32) + b3

    # ---- interior rows: P3pre = prj_3(C3) + nearest-upsampled P4 -----------
    cur = project(c3_ref[0]).reshape(th, W, Fp)
    p4v = p4_ref[0].astype(jnp.float32)                # (r4, W, Fp), W-replicated already
    up = jnp.broadcast_to(p4v[:, None], (r4, sh, W, Fp)).reshape(th, W, Fp)
    cur = cur + up
    # sublane-aligned (offset 8), unmasked store of the interior
    win_ref[1:th + 1, _PADL:_PADL + W, :] = cur.astype(cdt)

    # ---- guard columns read by the left/right taps (always zero) -----------
    win_ref[:, 0:_PADL, :] = jnp.zeros((th + 2, _PADL, Fp), cdt)
    win_ref[:, _PADL + W:_PADL + W + 1, :] = jnp.zeros((th + 2, 1, Fp), cdt)

    # ---- top / bottom halo rows; skip the projection on boundary tiles -----
    @pl.when(r > 0)
    def _():
        t = project(c3t_ref[0]).reshape(1, W, Fp) + p4t_ref[0].astype(jnp.float32)
        win_ref[0:1, _PADL:_PADL + W, :] = t.astype(cdt)

    @pl.when(r == 0)
    def _():
        win_ref[0:1, _PADL:_PADL + W, :] = jnp.zeros((1, W, Fp), cdt)

    @pl.when(r < nrt - 1)
    def _():
        bm = project(c3b_ref[0]).reshape(1, W, Fp) + p4b_ref[0].astype(jnp.float32)
        win_ref[th + 1:th + 2, _PADL:_PADL + W, :] = bm.astype(cdt)

    @pl.when(r == nrt - 1)
    def _():
        win_ref[th + 1:th + 2, _PADL:_PADL + W, :] = jnp.zeros((1, W, Fp), cdt)

    # ---- 3x3 conv: 9 accumulating K=Fp dots, bias folded into the acc ------
    # No im2col concatenate: each tap is a direct (th, W, Fp) read; the +-1 kw
    # offsets are handled by Mosaic as aligned loads + XLU sublane shifts.
    bc = bc_ref[...].astype(jnp.float32)
    acc = None
    for kh in range(3):
        for kw in range(3):
            tap = win_ref[kh:kh + th, _PADL - 1 + kw:_PADL - 1 + kw + W, :]
            d = jnp.dot(tap.reshape(th * W, Fp), wc_ref[3 * kh + kw],
                        preferred_element_type=jnp.float32)
            acc = d if acc is None else acc + d
    o_ref[...] = (acc + bc).reshape(1, th, W, Fp).astype(o_ref.dtype)


def _pick_tile_rows(H3, W3, Cin, sh, Fp, in_dt, p4_dt, out_dt, win_dt, w_dt,
                    budget):
    """Largest row tile (multiple of sh, divides H3) whose working set fits."""
    H4 = H3 // sh
    Wp = _PADL + _round_up(W3 + 1, 8)
    const_b = 2 * ((Cin + 2) * Fp + 9 * Fp * Fp) * _itemsize(w_dt)

    def est(th):
        r4 = th // sh
        b = const_b
        b += 2 * (th + 2) * W3 * Cin * _itemsize(in_dt)    # c3 tile + halo rows
        b += 2 * (r4 + 2) * W3 * Fp * _itemsize(p4_dt)     # p4 tile + halo rows
        b += 2 * th * W3 * Fp * _itemsize(out_dt)          # output tile
        b += (th + 2) * Wp * Fp * _itemsize(win_dt)        # window scratch
        b += 3 * th * W3 * Fp * 4                          # f32 temporaries
        return b

    for d in range(H4, 0, -1):
        if H4 % d:
            continue
        th = sh * d
        if est(th) <= budget:
            return th
    # TODO(synk): if even th == sh overflows the budget (very large W3*Cin),
    # the W axis would additionally need tiling; not implemented.
    return sh


def fused_proj_upsample_conv3x3(c3, p4w, w3, b3, wc9, bc, tile_rows,
                                vmem_limit):
    N, H3, W3, Cin = c3.shape
    _, H4, W3b, Fp = p4w.shape
    assert W3b == W3
    sh = H3 // H4
    th = tile_rows
    assert H3 % th == 0 and th % sh == 0
    rt = H3 // th
    r4 = th // sh
    Wp = _PADL + _round_up(W3 + 1, 8)
    cdt = w3.dtype

    def c3_map(n, r):
        return (n, r, 0, 0)

    def c3t_map(n, r):
        return (n, jnp.maximum(r * th - 1, 0), 0, 0)

    def c3b_map(n, r):
        return (n, jnp.minimum((r + 1) * th, H3 - 1), 0, 0)

    def p4_map(n, r):
        return (n, r, 0, 0)

    def p4t_map(n, r):
        return (n, jnp.maximum(r * r4 - 1, 0), 0, 0)

    def p4b_map(n, r):
        return (n, jnp.minimum((r + 1) * r4, H4 - 1), 0, 0)

    def cmap2(n, r):
        return (0, 0)

    def cmap3(n, r):
        return (0, 0, 0)

    return pl.pallas_call(
        _p3_fused_kernel,
        out_shape=jax.ShapeDtypeStruct((N, H3, W3, Fp), c3.dtype),
        grid_spec=pltpu.PrefetchScalarGridSpec(
            num_scalar_prefetch=0,
            grid=(N, rt),
            in_specs=[
                pl.BlockSpec((1, th, W3, Cin), c3_map),    # current row tile
                pl.BlockSpec((1, 1, W3, Cin), c3t_map),    # top halo row
                pl.BlockSpec((1, 1, W3, Cin), c3b_map),    # bottom halo row
                pl.BlockSpec((1, r4, W3, Fp), p4_map),     # P4 rows for tile
                pl.BlockSpec((1, 1, W3, Fp), p4t_map),     # P4 row for top halo
                pl.BlockSpec((1, 1, W3, Fp), p4b_map),     # P4 row for bottom halo
                pl.BlockSpec((Cin, Fp), cmap2),            # prj_3 weight
                pl.BlockSpec((1, Fp), cmap2),              # prj_3 bias
                pl.BlockSpec((9, Fp, Fp), cmap3),          # conv_3 weight (kh*3+kw)
                pl.BlockSpec((1, Fp), cmap2),              # conv_3 bias
            ],
            out_specs=pl.BlockSpec((1, th, W3, Fp), lambda n, r: (n, r, 0, 0)),
            scratch_shapes=[
                pltpu.VMEM((th + 2, Wp, Fp), cdt),         # padded conv window
            ],
        ),
        compiler_params=pltpu.CompilerParams(
            # No cross-iteration carry -> both axes are independent and can be
            # split across TensorCores (helps v7x at small batch).
            dimension_semantics=("parallel", "parallel"),
            vmem_limit_bytes=vmem_limit,
        ),
    )(c3, c3, c3, p4w, p4w, p4w, w3, b3, wc9, bc)


# ---------------------------------------------------------------------------
# Parameters (kaiming_uniform_ with a=1 => bound = sqrt(3 / fan_in), bias = 0)
# ---------------------------------------------------------------------------
def init_fpn_params(key, in_chan, features):
    def kuni(k, shape, fan_in):
        bound = math.sqrt(3.0 / fan_in)  # gain(a=1) = 1
        return jax.random.uniform(k, shape, jnp.float32, -bound, bound)

    k5, k4, k3, kc3 = jax.random.split(key, 4)
    # TODO(synk): conv_5 / conv_4 / conv_out6 / conv_out7 exist in __init__ but
    # never touch the returned P3, so they are intentionally omitted.
    return {
        "w_prj5": kuni(k5, (in_chan[0], features), in_chan[0]),
        "w_prj4": kuni(k4, (in_chan[1], features), in_chan[1]),
        "w_prj3": kuni(k3, (in_chan[2], features), in_chan[2]),
        "w_conv3": kuni(kc3, (3, 3, features, features), features * 9),
        "b_prj5": jnp.zeros((features,), jnp.float32),
        "b_prj4": jnp.zeros((features,), jnp.float32),
        "b_prj3": jnp.zeros((features,), jnp.float32),
        "b_conv3": jnp.zeros((features,), jnp.float32),
    }


# ---------------------------------------------------------------------------
# FPN forward (returns P3 only, matching the PyTorch module)
# ---------------------------------------------------------------------------
def fpn_forward(x_nchw_tuple, params, features, *, compute_dtype=jnp.bfloat16,
                tile_rows=None):
    C3, C4, C5 = x_nchw_tuple
    # NCHW -> NHWC.  TODO(synk): the entry/exit transposes still go through
    # XLA; writing the NCHW slab directly from the conv kernel would need an
    # in-kernel transpose and is left out.
    c3 = jnp.transpose(C3, (0, 2, 3, 1))
    c4 = jnp.transpose(C4, (0, 2, 3, 1))
    c5 = jnp.transpose(C5, (0, 2, 3, 1))

    N, H3, W3, _ = c3.shape
    _, H4, W4, _ = c4.shape
    _, H5, W5, _ = c5.shape
    F = features
    # Lane-dense channel padding.  TODO(synk): when F << 128 (this 32-channel
    # test config) the padding inflates P-tensor HBM bytes; production FPNs
    # use F >= 128 where it is free.  A masked narrow out_spec was not measured.
    Fp = _round_up(max(F, 128), 128)
    cdt = jnp.dtype(compute_dtype)

    cap = _vmem_capacity_bytes()
    budget = min(int(cap * 0.5), 64 << 20)
    vmem_limit = max(32 << 20, min(int(cap * 0.85), 100 << 20))

    # Zero-pad weights/biases to Fp channels (exact: padded channels stay 0).
    def pad_f(a):
        if Fp == F:
            return a
        return jnp.pad(a, [(0, 0)] * (a.ndim - 1) + [(0, Fp - F)])

    w5 = pad_f(params["w_prj5"]).astype(cdt)
    w4 = pad_f(params["w_prj4"]).astype(cdt)
    w3 = pad_f(params["w_prj3"]).astype(cdt)
    b5 = pad_f(params["b_prj5"]).astype(jnp.float32)
    b4 = pad_f(params["b_prj4"]).astype(jnp.float32)
    b3 = pad_f(params["b_prj3"]).astype(jnp.float32)
    wc = params["w_conv3"]                       # (3, 3, F, F) HWIO
    if Fp != F:
        wc = jnp.pad(wc, ((0, 0), (0, 0), (0, Fp - F), (0, Fp - F)))
    wc9 = wc.reshape(9, Fp, Fp).astype(cdt)      # [(kh,kw), cin, cout]
    bc = pad_f(params["b_conv3"]).astype(jnp.float32)

    # FPN levels have integer scale factors (strides 8/16/32); nearest == repeat.
    assert (H3 % H4 == 0 and W3 % W4 == 0 and H4 % H5 == 0 and W4 % W5 == 0), \
        "FPN expects integer nearest-neighbour scale factors"
    sh = H3 // H4
    sw = W3 // W4

    # --- P5 / P4 (tiny levels); stored lane-dense in compute dtype ----------
    P5 = pointwise_proj(c5, w5, b5, out_dtype=cdt,
                        vmem_budget=budget, vmem_limit=vmem_limit)
    up5 = nearest_upsample_int(P5, H4 // H5, W4 // W5)       # broadcast, no gather
    P4 = pointwise_proj(c4, w4, b4, add_nhwc=up5, out_dtype=cdt,
                        vmem_budget=budget, vmem_limit=vmem_limit)
    # Pre-replicate P4 along W only (broadcast+reshape, no gather); H
    # replication happens in VMEM inside the fused kernel.
    # TODO(synk): replicating W in-kernel too would drop this sw-times wider
    # HBM operand, but needs a sublane-merging reshape in Mosaic.
    P4w = nearest_upsample_int(P4, 1, sw)                    # (N, H4, W3, Fp)

    # --- fused prj_3 + upsample-add + 3x3 conv -------------------------------
    if tile_rows is None:
        tile_rows = _pick_tile_rows(H3, W3, c3.shape[3], sh, Fp,
                                    c3.dtype, P4w.dtype, c3.dtype, cdt, cdt,
                                    budget)
    assert H3 % tile_rows == 0 and tile_rows % sh == 0

    P3 = fused_proj_upsample_conv3x3(
        c3, P4w, w3, b3.reshape(1, Fp), wc9, bc.reshape(1, Fp),
        tile_rows, vmem_limit)

    out = P3[..., :F] if Fp != F else P3
    return jnp.transpose(out, (0, 3, 1, 2))                  # NHWC -> NCHW


# ---------------------------------------------------------------------------
# Pure-JAX reference (for correctness check only)
# ---------------------------------------------------------------------------
def fpn_forward_ref(x_nchw_tuple, params, features):
    C3, C4, C5 = x_nchw_tuple
    c3 = jnp.transpose(C3, (0, 2, 3, 1))
    c4 = jnp.transpose(C4, (0, 2, 3, 1))
    c5 = jnp.transpose(C5, (0, 2, 3, 1))

    def pw(x, w, b):
        return jnp.einsum("nhwc,cf->nhwf", x, w) + b

    def up(src, H, W):
        return nearest_upsample_int(src, H // src.shape[1], W // src.shape[2])

    P5 = pw(c5, params["w_prj5"], params["b_prj5"])
    P4 = pw(c4, params["w_prj4"], params["b_prj4"]) + up(P5, c4.shape[1],
                                                         c4.shape[2])
    P3 = pw(c3, params["w_prj3"], params["b_prj3"]) + up(P4, c3.shape[1],
                                                         c3.shape[2])
    P3 = (
        lax.conv_general_dilated(
            P3,
            params["w_conv3"],
            window_strides=(1, 1),
            padding="SAME",
            dimension_numbers=("NHWC", "HWIO", "NHWC"),
        )
        + params["b_conv3"]
    )
    return jnp.transpose(P3, (0, 3, 1, 2))


if __name__ == "__main__":
    key = jax.random.PRNGKey(0)
    kx3, kx4, kx5, kp = jax.random.split(key, 4)

    # Small FPN-consistent shapes: C3 stride 8, C4 stride 16, C5 stride 32.
    batch = 2
    features = 32
    in_chan = [16, 8, 4]  # [C5_channels, C4_channels, C3_channels]
    C3 = jax.random.normal(kx3, (batch, in_chan[2], 16, 16), jnp.float32)
    C4 = jax.random.normal(kx4, (batch, in_chan[1], 8, 8), jnp.float32)
    C5 = jax.random.normal(kx5, (batch, in_chan[0], 4, 4), jnp.float32)

    params = init_fpn_params(kp, in_chan, features)

    ref = jax.block_until_ready(fpn_forward_ref((C3, C4, C5), params, features))

    # float32 compute: exact check.  Exercises multi-tile halos (tile_rows 4/8)
    # and the single auto-picked tile path (None).
    for tr in (4, 8, None):
        out = jax.block_until_ready(
            fpn_forward((C3, C4, C5), params, features,
                        compute_dtype=jnp.float32, tile_rows=tr))
        assert out.shape == (batch, features, 16, 16), out.shape
        err = float(jnp.max(jnp.abs(out - ref)))
        assert jnp.allclose(out, ref, rtol=1e-3, atol=1e-3), err

    # bfloat16 MXU operands / bf16 P tensors (the performance configuration);
    # the looser tolerance is purely bf16 operand-rounding noise.
    out_bf16 = jax.block_until_ready(
        fpn_forward((C3, C4, C5), params, features,
                    compute_dtype=jnp.bfloat16, tile_rows=8))
    err_bf16 = float(jnp.max(jnp.abs(out_bf16 - ref)))
    assert jnp.allclose(out_bf16, ref, rtol=5e-2, atol=1.5e-1), err_bf16

    print("KERNEL_OK")
</pallas_src>

<mosaic_0001>
module attributes {stable_mosaic.version = 11 : i64} {
  func.func @_proj_kernel(%arg0: i32, %arg1: memref<32x16xf32, #tpu.memory_space<vmem>>, %arg2: memref<16x128xf32, #tpu.memory_space<vmem>>, %arg3: memref<1x128xf32, #tpu.memory_space<vmem>>, %arg4: memref<32x128xf32, #tpu.memory_space<vmem>>) attributes {dimension_semantics = [#tpu.dimension_semantics<parallel>], iteration_bounds = array<i64: 1>, scalar_prefetch = 0 : i64, scratch_operands = 0 : i64, tpu.core_type = #tpu.core_type<tc>, window_params = [{transform_indices = @transform_0, window_bounds = array<i64: 32, 16>}, {pipeline_mode = #tpu.pipeline_mode<synchronous>, transform_indices = @transform_1, window_bounds = array<i64: 16, 128>}, {pipeline_mode = #tpu.pipeline_mode<synchronous>, transform_indices = @transform_2, window_bounds = array<i64: 1, 128>}, {transform_indices = @transform_3, window_bounds = array<i64: 32, 128>}]} {
    %c0 = arith.constant 0 : index
    %c0_0 = arith.constant 0 : index
    %0 = vector.load %arg1[%c0, %c0_0] : memref<32x16xf32, #tpu.memory_space<vmem>>, vector<32x16xf32>
    %c0_1 = arith.constant 0 : index
    %c0_2 = arith.constant 0 : index
    %1 = vector.load %arg2[%c0_1, %c0_2] : memref<16x128xf32, #tpu.memory_space<vmem>>, vector<16x128xf32>
    %cst = arith.constant dense<0.000000e+00> : vector<32x128xf32>
    %2 = tpu.matmul %0, %1, %cst {dimension_numbers = #tpu.dot_dimension_numbers<[1], [0], [0], [1], [0, 0, 1, 1], [], []>} : vector<32x16xf32>, vector<16x128xf32>, vector<32x128xf32> -> vector<32x128xf32>
    %c0_3 = arith.constant 0 : index
    %c0_4 = arith.constant 0 : index
    %3 = vector.load %arg3[%c0_3, %c0_4] : memref<1x128xf32, #tpu.memory_space<vmem>>, vector<1x128xf32>
    %4 = vector.broadcast %3 : vector<1x128xf32> to vector<32x128xf32>
    %5 = arith.addf %2, %4 : vector<32x128xf32>
    %c0_5 = arith.constant 0 : index
    %c0_6 = arith.constant 0 : index
    %6 = vector.load %arg4[%c0_5, %c0_6] : memref<32x128xf32, #tpu.memory_space<vmem>>, vector<32x128xf32>
    tpu.vector_store %arg4[%c0_5, %c0_6], %5 {strides = array<i32>} : memref<32x128xf32, #tpu.memory_space<vmem>>, vector<32x128xf32>,
    return
  }
  func.func @transform_0(%arg0: i32) -> (i32, i32) {
    %c0_i32 = arith.constant 0 : i32
    %c0_i32_0 = arith.constant 0 : i32
    return %arg0, %c0_i32 : i32, i32
  }
  func.func @transform_1(%arg0: i32) -> (i32, i32) {
    %c0_i32 = arith.constant 0 : i32
    %c0_i32_0 = arith.constant 0 : i32
    %c0_i32_1 = arith.constant 0 : i32
    return %c0_i32, %c0_i32_0 : i32, i32
  }
  func.func @transform_2(%arg0: i32) -> (i32, i32) {
    %c0_i32 = arith.constant 0 : i32
    %c0_i32_0 = arith.constant 0 : i32
    %c0_i32_1 = arith.constant 0 : i32
    return %c0_i32, %c0_i32_0 : i32, i32
  }
  func.func @transform_3(%arg0: i32) -> (i32, i32) {
    %c0_i32 = arith.constant 0 : i32
    %c0_i32_0 = arith.constant 0 : i32
    return %arg0, %c0_i32 : i32, i32
  }
}

</mosaic_0001>

<llo_original>
// kernel: tpu_custom_call.1
$region0: #{tpu_custom_call.1}
  #allocation0 [shape = 'u32[]', space=smem, size = 0x4, offset = 0x4, fixed_abs, tag = 'smem constant byte address 0x4 - core index']
  #allocation1 [shape = 'u32[144,128]{1,0:T(1,128)}', space=vmem, size = 0x12000, scoped, tag = 'internal scratch']
  %s0 = inlined_call_operand.vmem [shape: f32[32,16], index: 0, kind: input, shape index: {}]
  %s1 = inlined_call_operand.vmem [shape: f32[16,128], index: 1, kind: input, shape index: {}]
  %s2 = inlined_call_operand.vmem [shape: f32[1,128], index: 2, kind: input, shape index: {}]
  %s3 = inlined_call_operand.hbm [shape: f32[32,128], index: 3, kind: output, shape index: {}]
  %s4 = sld [smem:[#allocation0]]
  $region22: #{tpu_custom_call.1} parent=0
    _
  %s6 = ssub.s32 1, %s4
  %s7 = scalar_select 0, %s6, %s4
  $region1: #{tpu_custom_call.1} parent=0
    #allocation2 [shape = 'u8[16384]{0}', space=vmem, size = 0x4000, scoped, tag = 'output window, operand 0, single buffered']
    #allocation3 [shape = 's32[1]{0}', space=sflag, size = 0x4, scoped, tag = 'scoped memory for tpu_custom_call.1']
    %8 = vsyncpa [#allocation3], 0
    // Predicated region
    $region2: #{tpu_custom_call.1} parent=1 // pred_check
      _
    $region3: #{tpu_custom_call.1} parent=1 // pred_check_branch
      %10 = sbr.rel (0) target = $region5
    $region4: #{tpu_custom_call.1} parent=1 // pred_region
      _
    $region5: #{tpu_custom_call.1} parent=1 // pred_fallthru
      _
    // Predicated region
    $region6: #{tpu_custom_call.1} parent=1 // pred_check
      _
    $region7: #{tpu_custom_call.1} parent=1 // pred_check_branch
      %12 = sbr.rel (0) target = $region9
    $region8: #{tpu_custom_call.1} parent=1 // pred_region
      _
    $region9: #{tpu_custom_call.1} parent=1 // pred_fallthru
      _
    // Predicated region
    $region10: #{tpu_custom_call.1} parent=1 // pred_check
      _
    $region11: #{tpu_custom_call.1} parent=1 // pred_check_branch
      %14 = sbr.rel (0) target = $region13
    $region12: #{tpu_custom_call.1} parent=1 // pred_region
      _
    $region13: #{tpu_custom_call.1} parent=1 // pred_fallthru
      _
    %v15 = vld [vmem:[%s0] sm:$0xff]
    %v16 = vld [vmem:[%s0 + $0x8] sm:$0xff]
    %v17 = vld [vmem:[%s0 + $0x10] sm:$0xff]
    %v18 = vld [vmem:[%s0 + $0x18] sm:$0xff]
    %v19 = vld [vmem:[%s1] sm:$0xff]
    %v20 = vld [vmem:[%s1 + $0x8] sm:$0xff]
    %v21 = vld [vmem:[%s2] sm:$0x1]
    %v23 = vlaneseq
    %v24 = vshrl.u32 %v23, 7
    %v25 = vsub.s32 0, %v24
    %v26 = vrot.slane %v21, %v25
    %vm28 = vcmask 130048
    %v30 = vsel %vm28, %v15, 0
    %v33 = vsel %vm28, %v16, 0
    %v36 = vsel %vm28, %v17, 0
    %v39 = vsel %vm28, %v18, 0
    %41 = vmatprep.subr.mxu0 0.0
    %42 = vmatpush1.msra.mxu0 %v19
    %43 = vmatprep.subr.mxu0 0.0
    %44 = vmatpush1.msra.mxu0 %v20
    %45 = vmatprep.subr.mxu0 0.0
    %46 = vmatpush1.msra.mxu0 0.0
    %47 = vmatprep.subr.mxu0 0.0
    %48 = vmatpush1.msra.mxu0 0.0
    %49 = vmatprep.subr.mxu0 0.0
    %50 = vmatpush1.msra.mxu0 0.0
    %51 = vmatprep.subr.mxu0 0.0
    %52 = vmatpush1.msra.mxu0 0.0
    %53 = vmatprep.subr.mxu0 0.0
    %54 = vmatpush1.msra.mxu0 0.0
    %55 = vmatprep.subr.mxu0 0.0
    %56 = vmatpush1.msra.mxu0 0.0
    %57 = vmatprep.subr.mxu0 0.0
    %58 = vmatpush1.msra.mxu0 0.0
    %59 = vmatprep.subr.mxu0 0.0
    %60 = vmatpush1.msra.mxu0 0.0
    %61 = vmatprep.subr.mxu0 0.0
    %62 = vmatpush1.msra.mxu0 0.0
    %63 = vmatprep.subr.mxu0 0.0
    %64 = vmatpush1.msra.mxu0 0.0
    %65 = vmatprep.subr.mxu0 0.0
    %66 = vmatpush1.msra.mxu0 0.0
    %67 = vmatprep.subr.mxu0 0.0
    %68 = vmatpush1.msra.mxu0 0.0
    %69 = vmatprep.subr.mxu0 0.0
    %70 = vmatpush1.msra.mxu0 0.0
    %71 = vmatprep.subr.mxu0 0.0
    %72 = vmatpush1.msra.mxu0 0.0
    %73 = vmatprep.subr.mxu0 0.0
    %74 = vmatpush1.msra.mxu0 0.0
    %75 = vmatprep.subr.mxu0 0.0
    %76 = vmatpush1.msra.mxu0 0.0
    %77 = vmatprep.subr.mxu0 0.0
    %78 = vmatpush1.msra.mxu0 0.0
    %79 = vmatprep.subr.mxu0 0.0
    %80 = vmatpush1.msra.mxu0 0.0
    %81 = vmatprep.subr.mxu0 0.0
    %82 = vmatpush1.msra.mxu0 0.0
    %83 = vmatprep.subr.mxu0 0.0
    %84 = vmatpush1.msra.mxu0 0.0
    %85 = vmatprep.subr.mxu0 0.0
    %86 = vmatpush1.msra.mxu0 0.0
    %87 = vmatprep.subr.mxu0 0.0
    %88 = vmatpush1.msra.mxu0 0.0
    %89 = vmatprep.subr.mxu0 0.0
    %90 = vmatpush1.msra.mxu0 0.0
    %91 = vmatprep.subr.mxu0 0.0
    %92 = vmatpush1.msra.mxu0 0.0
    %93 = vmatprep.subr.mxu0 0.0
    %94 = vmatpush1.msra.mxu0 0.0
    %95 = vmatprep.subr.mxu0 0.0
    %96 = vmatpush1.msra.mxu0 0.0
    %97 = vmatprep.subr.mxu0 0.0
    %98 = vmatpush1.msra.mxu0 0.0
    %99 = vmatprep.subr.mxu0 0.0
    %100 = vmatpush1.msra.mxu0 0.0
    %101 = vmatprep.subr.mxu0 0.0
    %102 = vmatpush1.msra.mxu0 0.0
    %103 = vmatprep.subr.mxu0 0.0
    %104 = vmatpush1.msra.mxu0 0.0
    %105 = vmatprep.mubr.f32.mxu0 0.0
    %106 = vmatmul.mubr.f32.gmra.mrb[0].mxu0 %v30
    %v107 = vpop.f32.mrb[0].mxu0
    %v108 = vadd.f32 %v26, %v107
    %v109 = vpop.f32.mrb[0].mxu0
    %110 = vmatprep.mubr.f32.mxu0 0.0
    %111 = vmatmul.mubr.f32.gmra.mrb[0].mxu0 %v33
    %v112 = vpop.f32.mrb[0].mxu0
    %v113 = vadd.f32 %v26, %v112
    %v114 = vpop.f32.mrb[0].mxu0
    %115 = vmatprep.mubr.f32.mxu0 0.0
    %116 = vmatmul.mubr.f32.gmra.mrb[0].mxu0 %v36
    %v117 = vpop.f32.mrb[0].mxu0
    %v118 = vadd.f32 %v26, %v117
    %v119 = vpop.f32.mrb[0].mxu0
    %120 = vmatprep.mubr.f32.mxu0 0.0
    %121 = vmatmul.mubr.f32.gmra.mrb[0].mxu0 %v39
    %v122 = vpop.f32.mrb[0].mxu0
    %v123 = vadd.f32 %v26, %v122
    %v124 = vpop.f32.mrb[0].mxu0
    %125 = vdwg.mxu0
    %126 = vst [vmem:[#allocation2] sm:$0xff] %v108
    %127 = vst [vmem:[#allocation2 + $0x8] sm:$0xff] %v113
    %128 = vst [vmem:[#allocation2 + $0x10] sm:$0xff] %v118
    %129 = vst [vmem:[#allocation2 + $0x18] sm:$0xff] %v123
    // Predicated region
    $region14: #{tpu_custom_call.1} parent=1 // pred_check
      _
    $region15: #{tpu_custom_call.1} parent=1 // pred_check_branch
      %131 = sbr.rel (0) target = $region17
    $region16: #{tpu_custom_call.1} parent=1 // pred_region
      %s133 = ssub.s32 512, 512
      %134 = vsyncadd [#allocation3], %s133
      %s135 = sshll.u32 [#allocation2], 4
      %s136 = int_to_ptr.vmem [resolvable:$true] %s135
      %141 = dma.vmem_to_hbm [thread:$0]  %s136, 512, %s3, [#allocation3], 128, 128, 8
    $region17: #{tpu_custom_call.1} parent=1 // pred_fallthru
      _
    // Predicated region
    $region18: #{tpu_custom_call.1} parent=1 // pred_check
      _
    $region19: #{tpu_custom_call.1} parent=1 // pred_check_branch
      %143 = sbr.rel (0) target = $region21
    $region20: #{tpu_custom_call.1} parent=1 // pred_region
      %144 = dma.done [#allocation3], 512
    $region21: #{tpu_custom_call.1} parent=1 // pred_fallthru
      _
    %145 = vsyncpa [#allocation3], 1

</llo_original>
